<compile_context>
chip_gen: v5e
topology: v5e:2x2
jax: 0.10.0
libtpu: 0.0.40
codegen_flags: <defaults>
</compile_context>

<pallas_src>
import jax
import jax.numpy as jnp
from jax.experimental import pallas as pl
from jax.experimental.pallas import tpu as pltpu


def _value_kernel(task_ref,                       # scalar prefetch (SMEM, int32[1])
                  x_ref, w1_ref, b1_ref,          # state, fc1
                  w2_ref, b2_ref,                 # fc2[task]  (task axis squeezed)
                  wv_ref, bv_ref,                 # v[task]    (wv squeezed, bv in SMEM)
                  out_ref):
    t = task_ref[0]

    # fc1 + relu : (B, D_in) @ (D_in, H1) -> (B, H1)     (bf16 MXU, f32 acc)
    x = x_ref[...].astype(jnp.bfloat16)
    h1 = jnp.dot(x, w1_ref[...], preferred_element_type=jnp.float32) + b1_ref[...]
    h1 = jnp.maximum(h1, 0.0)

    # fc2[task] + relu : (B, H1) @ (H1, H2) -> (B, H2)   (bf16 MXU, f32 acc)
    h2 = jnp.dot(h1.astype(jnp.bfloat16), w2_ref[...],
                 preferred_element_type=jnp.float32) + b2_ref[...]
    h2 = jnp.maximum(h2, 0.0)

    # v[task] : output width 1 -> VPU multiply + XLU lane reduction (no MXU pass)
    v = jnp.sum(h2 * wv_ref[...], axis=-1, keepdims=True) + bv_ref[t]
    out_ref[...] = v.astype(out_ref.dtype)


@jax.jit
def value_network_forward(state, task, params):
    """state: (B, D_in) f32, task: () int32, params: dict of stacked weights."""
    B, D_in = state.shape
    H1 = params["w1"].shape[1]
    H2 = params["w2"].shape[2]

    task_arr = jnp.reshape(task.astype(jnp.int32), (1,))

    grid_spec = pltpu.PrefetchScalarGridSpec(
        num_scalar_prefetch=1,
        grid=(1,),
        in_specs=[
            pl.BlockSpec((B, D_in), lambda i, t: (0, 0)),                      # state
            pl.BlockSpec((D_in, H1), lambda i, t: (0, 0)),                     # W1^T (bf16)
            pl.BlockSpec((1, H1), lambda i, t: (0, 0)),                        # b1
            pl.BlockSpec((pl.Squeezed(), H1, H2), lambda i, t: (t[0], 0, 0)),  # W2^T[task] (bf16)
            pl.BlockSpec((pl.Squeezed(), 1, H2), lambda i, t: (t[0], 0, 0)),   # b2[task]
            pl.BlockSpec((pl.Squeezed(), 1, H2), lambda i, t: (t[0], 0, 0)),   # wv[task] as row
            pl.BlockSpec(memory_space=pltpu.MemorySpace.SMEM),                 # bv (6,) scalars
        ],
        out_specs=pl.BlockSpec((B, 1), lambda i, t: (0, 0)),
    )

    return pl.pallas_call(
        _value_kernel,
        out_shape=jax.ShapeDtypeStruct((B, 1), jnp.float32),
        grid_spec=grid_spec,
        compiler_params=pltpu.CompilerParams(
            dimension_semantics=("arbitrary",)),
    )(task_arr,
      state, params["w1"], params["b1"],
      params["w2"], params["b2"], params["wv"], params["bv"])


def init_params(key, input_dims, fc1_dims, fc2_dims, n_tasks=6):
    """PyTorch-style init U(-1/sqrt(fan_in), 1/sqrt(fan_in)).
    Matmul weights stored pre-transposed (in, out); w1/w2 stored in bf16
    (MXU operands), biases and the value-head row stay f32."""
    ks = jax.random.split(key, 6)

    def u(k, shape, fan_in, dtype=jnp.float32):
        bound = 1.0 / jnp.sqrt(float(fan_in))
        return jax.random.uniform(k, shape, jnp.float32, -bound, bound).astype(dtype)

    return {
        "w1": u(ks[0], (input_dims, fc1_dims), input_dims, jnp.bfloat16),
        "b1": u(ks[1], (1, fc1_dims), input_dims),
        "w2": u(ks[2], (n_tasks, fc1_dims, fc2_dims), fc1_dims, jnp.bfloat16),
        "b2": u(ks[3], (n_tasks, 1, fc2_dims), fc1_dims),
        "wv": u(ks[4], (n_tasks, 1, fc2_dims), fc2_dims),   # row layout for VPU reduce
        "bv": u(ks[5], (n_tasks,), fc2_dims),
    }


def reference_forward(state, task, params):
    """Pure-JAX reference mirroring the kernel's bf16-operand / f32-accumulate math."""
    t = int(task)
    h1 = jnp.dot(state.astype(jnp.bfloat16), params["w1"],
                 preferred_element_type=jnp.float32) + params["b1"]
    h1 = jnp.maximum(h1, 0.0)
    h2 = jnp.dot(h1.astype(jnp.bfloat16), params["w2"][t],
                 preferred_element_type=jnp.float32) + params["b2"][t]
    h2 = jnp.maximum(h2, 0.0)
    return jnp.sum(h2 * params["wv"][t], axis=-1, keepdims=True) + params["bv"][t]


if __name__ == "__main__":
    B = 2            # batch
    INPUT_DIMS = 8   # observation dim
    FC1 = 128        # fc1_dims (lane-aligned, small)
    FC2 = 128        # fc2_dims

    key = jax.random.PRNGKey(0)
    k_params, k_state = jax.random.split(key)

    params = init_params(k_params, INPUT_DIMS, FC1, FC2)
    state = jax.random.normal(k_state, (B, INPUT_DIMS), jnp.float32)
    task = jnp.int32(3)

    out = value_network_forward(state, task, params)
    out = jax.block_until_ready(out)

    ref = reference_forward(state, task, params)
    assert out.shape == (B, 1)
    assert jnp.allclose(out, ref, atol=1e-3, rtol=1e-3), (out, ref)

    print("KERNEL_OK")
</pallas_src>

<mosaic_0001>
module attributes {stable_mosaic.version = 11 : i64} {
  func.func @_value_kernel(%arg0: i32, %arg1: memref<1xi32, #tpu.memory_space<smem>>, %arg2: memref<2x8xf32, #tpu.memory_space<vmem>>, %arg3: memref<8x128xbf16, #tpu.memory_space<vmem>>, %arg4: memref<1x128xf32, #tpu.memory_space<vmem>>, %arg5: memref<1x128x128xbf16, #tpu.memory_space<vmem>>, %arg6: memref<1x1x128xf32, #tpu.memory_space<vmem>>, %arg7: memref<1x1x128xf32, #tpu.memory_space<vmem>>, %arg8: memref<6xf32, #tpu.memory_space<smem>>, %arg9: memref<2x1xf32, #tpu.memory_space<vmem>>) attributes {dimension_semantics = [#tpu.dimension_semantics<arbitrary>], iteration_bounds = array<i64: 1>, scalar_prefetch = 1 : i64, scratch_operands = 0 : i64, tpu.core_type = #tpu.core_type<tc>, window_params = [{pipeline_mode = #tpu.pipeline_mode<synchronous>, transform_indices = @transform_0, window_bounds = array<i64: 2, 8>}, {pipeline_mode = #tpu.pipeline_mode<synchronous>, transform_indices = @transform_1, window_bounds = array<i64: 8, 128>}, {pipeline_mode = #tpu.pipeline_mode<synchronous>, transform_indices = @transform_2, window_bounds = array<i64: 1, 128>}, {transform_indices = @transform_3, window_bounds = array<i64: 1, 128, 128>}, {transform_indices = @transform_4, window_bounds = array<i64: 1, 1, 128>}, {transform_indices = @transform_5, window_bounds = array<i64: 1, 1, 128>}, {transform_indices = @transform_6, window_bounds = array<i64: 6>}, {pipeline_mode = #tpu.pipeline_mode<synchronous>, transform_indices = @transform_7, window_bounds = array<i64: 2, 1>}]} {
    %c0 = arith.constant 0 : index
    %0 = memref.load %arg1[%c0] : memref<1xi32, #tpu.memory_space<smem>>
    %c0_0 = arith.constant 0 : index
    %c0_1 = arith.constant 0 : index
    %1 = vector.load %arg2[%c0_0, %c0_1] : memref<2x8xf32, #tpu.memory_space<vmem>>, vector<2x8xf32>
    %2 = arith.truncf %1 : vector<2x8xf32> to vector<2x8xbf16>
    %c0_2 = arith.constant 0 : index
    %c0_3 = arith.constant 0 : index
    %3 = vector.load %arg3[%c0_2, %c0_3] : memref<8x128xbf16, #tpu.memory_space<vmem>>, vector<8x128xbf16>
    %cst = arith.constant dense<0.000000e+00> : vector<2x128xf32>
    %4 = tpu.matmul %2, %3, %cst {dimension_numbers = #tpu.dot_dimension_numbers<[1], [0], [0], [1], [0, 0, 1, 1], [], []>} : vector<2x8xbf16>, vector<8x128xbf16>, vector<2x128xf32> -> vector<2x128xf32>
    %c0_4 = arith.constant 0 : index
    %c0_5 = arith.constant 0 : index
    %5 = vector.load %arg4[%c0_4, %c0_5] : memref<1x128xf32, #tpu.memory_space<vmem>>, vector<1x128xf32>
    %6 = vector.broadcast %5 : vector<1x128xf32> to vector<2x128xf32>
    %7 = arith.addf %4, %6 : vector<2x128xf32>
    %cst_6 = arith.constant 0.000000e+00 : f32
    %8 = vector.broadcast %cst_6 : f32 to vector<2x128xf32>
    %9 = arith.maximumf %7, %8 : vector<2x128xf32>
    %10 = arith.truncf %9 : vector<2x128xf32> to vector<2x128xbf16>
    %c0_7 = arith.constant 0 : index
    %c0_8 = arith.constant 0 : index
    %c0_9 = arith.constant 0 : index
    %11 = vector.load %arg5[%c0_7, %c0_8, %c0_9] : memref<1x128x128xbf16, #tpu.memory_space<vmem>>, vector<1x128x128xbf16>
    %12 = vector.shape_cast %11 : vector<1x128x128xbf16> to vector<128x128xbf16>
    %cst_10 = arith.constant dense<0.000000e+00> : vector<2x128xf32>
    %13 = tpu.matmul %10, %12, %cst_10 {dimension_numbers = #tpu.dot_dimension_numbers<[1], [0], [0], [1], [0, 0, 1, 1], [], []>} : vector<2x128xbf16>, vector<128x128xbf16>, vector<2x128xf32> -> vector<2x128xf32>
    %c0_11 = arith.constant 0 : index
    %c0_12 = arith.constant 0 : index
    %c0_13 = arith.constant 0 : index
    %14 = vector.load %arg6[%c0_11, %c0_12, %c0_13] : memref<1x1x128xf32, #tpu.memory_space<vmem>>, vector<1x1x128xf32>
    %15 = vector.shape_cast %14 : vector<1x1x128xf32> to vector<1x128xf32>
    %16 = vector.broadcast %15 : vector<1x128xf32> to vector<2x128xf32>
    %17 = arith.addf %13, %16 : vector<2x128xf32>
    %cst_14 = arith.constant 0.000000e+00 : f32
    %18 = vector.broadcast %cst_14 : f32 to vector<2x128xf32>
    %19 = arith.maximumf %17, %18 : vector<2x128xf32>
    %c0_15 = arith.constant 0 : index
    %c0_16 = arith.constant 0 : index
    %c0_17 = arith.constant 0 : index
    %20 = vector.load %arg7[%c0_15, %c0_16, %c0_17] : memref<1x1x128xf32, #tpu.memory_space<vmem>>, vector<1x1x128xf32>
    %21 = vector.shape_cast %20 : vector<1x1x128xf32> to vector<1x128xf32>
    %22 = vector.broadcast %21 : vector<1x128xf32> to vector<2x128xf32>
    %23 = arith.mulf %19, %22 : vector<2x128xf32>
    %cst_18 = arith.constant dense<0.000000e+00> : vector<2xf32>
    %24 = vector.multi_reduction <add>, %23, %cst_18 [1] : vector<2x128xf32> to vector<2xf32>
    %25 = vector.shape_cast %24 : vector<2xf32> to vector<2x1xf32>
    %26 = arith.index_cast %0 : i32 to index
    %27 = memref.load %arg8[%26] : memref<6xf32, #tpu.memory_space<smem>>
    %28 = vector.broadcast %27 : f32 to vector<2x1xf32>
    %29 = arith.addf %25, %28 : vector<2x1xf32>
    %c0_19 = arith.constant 0 : index
    %c0_20 = arith.constant 0 : index
    %30 = vector.load %arg9[%c0_19, %c0_20] : memref<2x1xf32, #tpu.memory_space<vmem>>, vector<2x1xf32>
    tpu.vector_store %arg9[%c0_19, %c0_20], %29 {strides = array<i32>} : memref<2x1xf32, #tpu.memory_space<vmem>>, vector<2x1xf32>,
    return
  }
  func.func @transform_0(%arg0: i32, %arg1: memref<1xi32, #tpu.memory_space<smem>>) -> (i32, i32) {
    %c0_i32 = arith.constant 0 : i32
    %c0_i32_0 = arith.constant 0 : i32
    %c0_i32_1 = arith.constant 0 : i32
    return %c0_i32, %c0_i32_0 : i32, i32
  }
  func.func @transform_1(%arg0: i32, %arg1: memref<1xi32, #tpu.memory_space<smem>>) -> (i32, i32) {
    %c0_i32 = arith.constant 0 : i32
    %c0_i32_0 = arith.constant 0 : i32
    %c0_i32_1 = arith.constant 0 : i32
    return %c0_i32, %c0_i32_0 : i32, i32
  }
  func.func @transform_2(%arg0: i32, %arg1: memref<1xi32, #tpu.memory_space<smem>>) -> (i32, i32) {
    %c0_i32 = arith.constant 0 : i32
    %c0_i32_0 = arith.constant 0 : i32
    %c0_i32_1 = arith.constant 0 : i32
    return %c0_i32, %c0_i32_0 : i32, i32
  }
  func.func @transform_3(%arg0: i32, %arg1: memref<1xi32, #tpu.memory_space<smem>>) -> (i32, i32, i32) {
    %c0 = arith.constant 0 : index
    %0 = memref.load %arg1[%c0] : memref<1xi32, #tpu.memory_space<smem>>
    %c0_i32 = arith.constant 0 : i32
    %c0_i32_0 = arith.constant 0 : i32
    %c0_i32_1 = arith.constant 0 : i32
    return %0, %c0_i32, %c0_i32_0 : i32, i32, i32
  }
  func.func @transform_4(%arg0: i32, %arg1: memref<1xi32, #tpu.memory_space<smem>>) -> (i32, i32, i32) {
    %c0 = arith.constant 0 : index
    %0 = memref.load %arg1[%c0] : memref<1xi32, #tpu.memory_space<smem>>
    %c0_i32 = arith.constant 0 : i32
    %c0_i32_0 = arith.constant 0 : i32
    %c0_i32_1 = arith.constant 0 : i32
    return %0, %c0_i32, %c0_i32_0 : i32, i32, i32
  }
  func.func @transform_5(%arg0: i32, %arg1: memref<1xi32, #tpu.memory_space<smem>>) -> (i32, i32, i32) {
    %c0 = arith.constant 0 : index
    %0 = memref.load %arg1[%c0] : memref<1xi32, #tpu.memory_space<smem>>
    %c0_i32 = arith.constant 0 : i32
    %c0_i32_0 = arith.constant 0 : i32
    %c0_i32_1 = arith.constant 0 : i32
    return %0, %c0_i32, %c0_i32_0 : i32, i32, i32
  }
  func.func @transform_6(%arg0: i32, %arg1: memref<1xi32, #tpu.memory_space<smem>>) -> i32 {
    %c0_i32 = arith.constant 0 : i32
    %c0_i32_0 = arith.constant 0 : i32
    return %c0_i32 : i32
  }
  func.func @transform_7(%arg0: i32, %arg1: memref<1xi32, #tpu.memory_space<smem>>) -> (i32, i32) {
    %c0_i32 = arith.constant 0 : i32
    %c0_i32_0 = arith.constant 0 : i32
    %c0_i32_1 = arith.constant 0 : i32
    return %c0_i32, %c0_i32_0 : i32, i32
  }
}

</mosaic_0001>

<llo_original>
// kernel: value_network_forward.1
$region0: #{value_network_forward.1}
  #allocation0 [shape = 'u32[]', space=smem, size = 0x4, offset = 0x4, fixed_abs, tag = 'smem constant byte address 0x4 - core index']
  #allocation1 [shape = 'u32[72,128]{1,0:T(1,128)}', space=vmem, size = 0x9000, scoped, tag = 'internal scratch']
  #allocation2 [shape = 's32[1]{0}', space=sflag, size = 0x4, scoped, tag = 'scoped memory for value_network_forward.1']
  #allocation3 [shape = 's32[1]{0:T(128)S(6)}', space=smem, size = 0x200, scoped, tag = 'prefetched SMEM operand 0']
  %s0 = inlined_call_operand.<no memory space> [shape: s32[1], index: 0, kind: input, shape index: {}]
  %s1 = inlined_call_operand.vmem [shape: f32[2,8], index: 1, kind: input, shape index: {}]
  %s2 = inlined_call_operand.hbm [shape: bf16[8,128], index: 2, kind: input, shape index: {}]
  %s3 = inlined_call_operand.hbm [shape: f32[1,128], index: 3, kind: input, shape index: {}]
  %s4 = inlined_call_operand.hbm [shape: bf16[6,128,128], index: 4, kind: input, shape index: {}]
  %s5 = inlined_call_operand.hbm [shape: f32[6,1,128], index: 5, kind: input, shape index: {}]
  %s6 = inlined_call_operand.vmem [shape: f32[6,1,128], index: 6, kind: input, shape index: {}]
  %s7 = inlined_call_operand.hbm [shape: f32[6], index: 7, kind: input, shape index: {}]
  %s8 = inlined_call_operand.vmem [shape: f32[2,1], index: 8, kind: output, shape index: {}]
  %s9 = sld [smem:[#allocation0]]
  $region58: #{value_network_forward.1} parent=0
    _
  %s11 = ssub.s32 1, %s9
  %s12 = scalar_select 0, %s11, %s9
  %13 = sst [smem:[#allocation3]] %s0
  $region1: #{value_network_forward.1} parent=0
    #allocation4 [shape = 'u8[2048]{0}', space=vmem, size = 0x800, scoped, tag = 'input window, operand 2, single buffered']
    #allocation5 [shape = 's32[1]{0}', space=sflag, size = 0x4, scoped, tag = 'scoped memory for value_network_forward.1']
    #allocation6 [shape = 's32[1]{0}', space=sflag, size = 0x4, scoped, tag = 'scoped memory for value_network_forward.1']
    #allocation7 [shape = 'u8[512]{0}', space=vmem, size = 0x400, scoped, tag = 'input window, operand 3, single buffered']
    #allocation8 [shape = 's32[1]{0}', space=sflag, size = 0x4, scoped, tag = 'scoped memory for value_network_forward.1']
    #allocation9 [shape = 'u8[32768]{0}', space=vmem, size = 0x8000, scoped, tag = 'input window, operand 4, single buffered']
    #allocation10 [shape = 'u8[512]{0}', space=vmem, size = 0x400, scoped, tag = 'input window, operand 5, single buffered']
    #allocation11 [shape = 's32[1]{0}', space=sflag, size = 0x4, scoped, tag = 'scoped memory for value_network_forward.1']
    #allocation12 [shape = 'u8[512]{0}', space=smem, size = 0x200, scoped, tag = 'input window, operand 7, single buffered']
    %14 = vsyncpa [#allocation5], 0
    %15 = vsyncpa [#allocation8], 0
    %16 = vsyncpa [#allocation11], 0
    %17 = vsyncpa [#allocation6], 0
    // Predicated region
    $region2: #{value_network_forward.1} parent=1 // pred_check
      _
    $region3: #{value_network_forward.1} parent=1 // pred_check_branch
      %19 = sbr.rel (0) target = $region5
    $region4: #{value_network_forward.1} parent=1 // pred_region
      _
    $region5: #{value_network_forward.1} parent=1 // pred_fallthru
      _
    // Predicated region
    $region6: #{value_network_forward.1} parent=1 // pred_check
      _
    $region7: #{value_network_forward.1} parent=1 // pred_check_branch
      %21 = sbr.rel (0) target = $region9
    $region8: #{value_network_forward.1} parent=1 // pred_region
      %23 = vsyncadd [#allocation5], 0
      %s25 = sshll.u32 %s2, 4
      %s26 = int_to_ptr.hbm [resolvable:$true] %s25
      %s27 = sshll.u32 [#allocation4], 4
      %s28 = int_to_ptr.vmem [resolvable:$true] %s27
      %30 = dma.hbm_to_vmem [thread:$0]  %s26, 64, %s28, [#allocation5]
    $region9: #{value_network_forward.1} parent=1 // pred_fallthru
      _
    // Predicated region
    $region10: #{value_network_forward.1} parent=1 // pred_check
      _
    $region11: #{value_network_forward.1} parent=1 // pred_check_branch
      %32 = sbr.rel (0) target = $region13
    $region12: #{value_network_forward.1} parent=1 // pred_region
      %34 = vsyncadd [#allocation8], 0
      %s36 = sshll.u32 %s3, 4
      %s37 = int_to_ptr.hbm [resolvable:$true] %s36
      %s38 = sshll.u32 [#allocation7], 4
      %s39 = int_to_ptr.vmem [resolvable:$true] %s38
      %41 = dma.hbm_to_vmem [thread:$0]  %s37, 16, %s39, [#allocation8]
    $region13: #{value_network_forward.1} parent=1 // pred_fallthru
      _
    // Predicated region
    $region14: #{value_network_forward.1} parent=1 // pred_check
      _
    $region15: #{value_network_forward.1} parent=1 // pred_check_branch
      %43 = sbr.rel (0) target = $region17
    $region16: #{value_network_forward.1} parent=1 // pred_region
      %s44 = sld [smem:[#allocation3]]
      %46 = vsyncadd [#allocation8], 0
      %s47 = smul.addr %s44, 16
      %s48 = smul.addr %s47, 4
      %s49 = scalar_lea.hbm %s4, %s48
      %s50 = sshll.u32 %s49, 4
      %s51 = int_to_ptr.hbm [resolvable:$true] %s50
      %s52 = sshll.u32 [#allocation9], 4
      %s53 = int_to_ptr.vmem [resolvable:$true] %s52
      %58 = dma.hbm_to_vmem [thread:$0]  %s51, 1024, %s53, [#allocation8], 64, 64, 4
    $region17: #{value_network_forward.1} parent=1 // pred_fallthru
      _
    // Predicated region
    $region18: #{value_network_forward.1} parent=1 // pred_check
      _
    $region19: #{value_network_forward.1} parent=1 // pred_check_branch
      %60 = sbr.rel (0) target = $region21
    $region20: #{value_network_forward.1} parent=1 // pred_region
      %s61 = sld [smem:[#allocation3]]
      %63 = vsyncadd [#allocation11], 0
      %s64 = scalar_lea.hbm %s5, %s61
      %s66 = sshll.u32 %s64, 4
      %s67 = int_to_ptr.hbm [resolvable:$true] %s66
      %s68 = sshll.u32 [#allocation10], 4
      %s69 = int_to_ptr.vmem [resolvable:$true] %s68
      %71 = dma.hbm_to_vmem [thread:$0]  %s67, 16, %s69, [#allocation11]
    $region21: #{value_network_forward.1} parent=1 // pred_fallthru
      _
    // Predicated region
    $region22: #{value_network_forward.1} parent=1 // pred_check
      _
    $region23: #{value_network_forward.1} parent=1 // pred_check_branch
      %73 = sbr.rel (0) target = $region25
    $region24: #{value_network_forward.1} parent=1 // pred_region
      %s74 = sld [smem:[#allocation3]]
      %p75 = scmp.lt.s32.totalorder %s74, 5
      %s76 = scalar_select %p75, %s74, 5
      %s77 = scalar_lea.vmem %s6, %s76
      %s78 = sld [smem:[#allocation3]]
    $region25: #{value_network_forward.1} parent=1 // pred_fallthru
      _
    // Predicated region
    $region26: #{value_network_forward.1} parent=1 // pred_check
      _
    $region27: #{value_network_forward.1} parent=1 // pred_check_branch
      %80 = sbr.rel (0) target = $region29
    $region28: #{value_network_forward.1} parent=1 // pred_region
      %82 = vsyncadd [#allocation6], 0
      %s84 = sshll.u32 %s7, 4
      %s85 = int_to_ptr.hbm [resolvable:$true] %s84
      %87 = dma.hbm_to_smem %s85, 16, [#allocation12], [#allocation6]
    $region29: #{value_network_forward.1} parent=1 // pred_fallthru
      _
    // Predicated region
    $region30: #{value_network_forward.1} parent=1 // pred_check
      _
    $region31: #{value_network_forward.1} parent=1 // pred_check_branch
      %89 = sbr.rel (0) target = $region33
    $region32: #{value_network_forward.1} parent=1 // pred_region
      %91 = dma.done [#allocation5], 64
    $region33: #{value_network_forward.1} parent=1 // pred_fallthru
      _
    // Predicated region
    $region34: #{value_network_forward.1} parent=1 // pred_check
      _
    $region35: #{value_network_forward.1} parent=1 // pred_check_branch
      %93 = sbr.rel (0) target = $region37
    $region36: #{value_network_forward.1} parent=1 // pred_region
      %95 = dma.done [#allocation8], 16
    $region37: #{value_network_forward.1} parent=1 // pred_fallthru
      _
    // Predicated region
    $region38: #{value_network_forward.1} parent=1 // pred_check
      _
    $region39: #{value_network_forward.1} parent=1 // pred_check_branch
      %97 = sbr.rel (0) target = $region41
    $region40: #{value_network_forward.1} parent=1 // pred_region
      %99 = dma.done [#allocation8], 1024
    $region41: #{value_network_forward.1} parent=1 // pred_fallthru
      _
    // Predicated region
    $region42: #{value_network_forward.1} parent=1 // pred_check
      _
    $region43: #{value_network_forward.1} parent=1 // pred_check_branch
      %101 = sbr.rel (0) target = $region45
    $region44: #{value_network_forward.1} parent=1 // pred_region
      %103 = dma.done [#allocation11], 16
    $region45: #{value_network_forward.1} parent=1 // pred_fallthru
      _
    // Predicated region
    $region46: #{value_network_forward.1} parent=1 // pred_check
      _
    $region47: #{value_network_forward.1} parent=1 // pred_check_branch
      %105 = sbr.rel (0) target = $region49
    $region48: #{value_network_forward.1} parent=1 // pred_region
      %107 = dma.done [#allocation6], 16
    $region49: #{value_network_forward.1} parent=1 // pred_fallthru
      _
    %108 = sfence
    %s109 = sld [smem:[#allocation3]]
    %p110 = scmp.lt.s32.totalorder %s109, 5
    %s111 = scalar_select %p110, %s109, 5
    %s112 = scalar_lea.vmem %s6, %s111
    %s113 = sld [smem:[#allocation3]]
    %s114 = sld [smem:[#allocation3]]
    %s115 = sld [smem:[#allocation3]]
    %p116 = scmp.lt.s32.totalorder %s115, 5
    %s117 = scalar_select %p116, %s115, 5
    %s118 = scalar_lea.vmem %s6, %s117
    %s119 = sld [smem:[#allocation3]]
    %s121 = sld [smem:[#allocation3]]
    %v122 = vld [vmem:[%s1] sm:$0x3]
    %v123 = vpack.c.bf16 %v122, %v122
    %v124 = vld [vmem:[#allocation4] sm:$0xf]
    %v125 = vld [vmem:[#allocation7] sm:$0x1]
    %v127 = vperm.slane %v125, 0
    %vm129 = vcmask 64512
    %v131 = vsel %vm129, %v123, 0
    %vm133 = vcmask 1043456
    %v135 = vsel %vm133, %v124, 0
    %137 = vmatpush.bf16.msra.mxu0 0
    %138 = vmatpush.bf16.msra.mxu0 0
    %139 = vmatpush.bf16.msra.mxu0 0
    %140 = vmatpush.bf16.msra.mxu0 0
    %141 = vmatpush.bf16.msra.mxu0 0
    %142 = vmatpush.bf16.msra.mxu0 0
    %143 = vmatpush.bf16.msra.mxu0 0
    %144 = vmatpush.bf16.msra.mxu0 %v135
    %145 = vmatmul.bf16.gmra.mxu0 %v131
    %v146 = vpop.f32.mrf.mxu0
    %v147 = vadd.f32 %v127, %v146
    %v148 = vpop.f32.mrf.mxu0
    %149 = vdwg.mxu0
    %v150 = vmax.f32 %v147, 0.0
    %v151 = vpack.c.bf16 %v150, %v150
    %v152 = vld [vmem:[#allocation9] sm:$0xf]
    %v153 = vld [vmem:[#allocation9 + $0x4] sm:$0xf]
    %v154 = vld [vmem:[#allocation9 + $0x8] sm:$0xf]
    %v155 = vld [vmem:[#allocation9 + $0xc] sm:$0xf]
    %v156 = vld [vmem:[#allocation9 + $0x10] sm:$0xf]
    %v157 = vld [vmem:[#allocation9 + $0x14] sm:$0xf]
    %v158 = vld [vmem:[#allocation9 + $0x18] sm:$0xf]
    %v159 = vld [vmem:[#allocation9 + $0x1c] sm:$0xf]
    %v160 = vld [vmem:[#allocation9 + $0x20] sm:$0xf]
    %v161 = vld [vmem:[#allocation9 + $0x24] sm:$0xf]
    %v162 = vld [vmem:[#allocation9 + $0x28] sm:$0xf]
    %v163 = vld [vmem:[#allocation9 + $0x2c] sm:$0xf]
    %v164 = vld [vmem:[#allocation9 + $0x30] sm:$0xf]
    %v165 = vld [vmem:[#allocation9 + $0x34] sm:$0xf]
    %v166 = vld [vmem:[#allocation9 + $0x38] sm:$0xf]
    %v167 = vld [vmem:[#allocation9 + $0x3c] sm:$0xf]
    %v168 = vld [vmem:[#allocation10] sm:$0x1]
    %v170 = vperm.slane %v168, 0
    %v188 = vunpack.c.l.b16 %v152
    %v189 = vunpack.c.l.b16 %v153
    %v190 = vunpack.c.l.b16 %v154
    %v191 = vunpack.c.l.b16 %v155
    %v192 = vunpack.c.l.b16 %v156
    %v193 = vunpack.c.l.b16 %v157
    %v194 = vunpack.c.l.b16 %v158
    %v195 = vunpack.c.l.b16 %v159
    %v196 = vunpack.c.l.b16 %v160
    %v197 = vunpack.c.l.b16 %v161
    %v198 = vunpack.c.l.b16 %v162
    %v199 = vunpack.c.l.b16 %v163
    %v200 = vunpack.c.l.b16 %v164
    %v201 = vunpack.c.l.b16 %v165
    %v202 = vunpack.c.l.b16 %v166
    %v203 = vunpack.c.l.b16 %v167
    %v204 = vpack.c.b16 %v189, %v188
    %v205 = vpack.c.b16 %v191, %v190
    %v206 = vpack.c.b16 %v193, %v192
    %v207 = vpack.c.b16 %v195, %v194
    %v208 = vpack.c.b16 %v197, %v196
    %v209 = vpack.c.b16 %v199, %v198
    %v210 = vpack.c.b16 %v201, %v200
    %v211 = vpack.c.b16 %v203, %v202
    %220 = vmatpush.bf16.msra.mxu0 %v211
    %221 = vmatpush.bf16.msra.mxu0 %v210
    %222 = vmatpush.bf16.msra.mxu0 %v209
    %223 = vmatpush.bf16.msra.mxu0 %v208
    %224 = vmatpush.bf16.msra.mxu0 %v207
    %225 = vmatpush.bf16.msra.mxu0 %v206
    %226 = vmatpush.bf16.msra.mxu0 %v205
    %227 = vmatpush.bf16.msra.mxu0 %v204
    %228 = vmatmul.bf16.gmra.mxu0 %v151
    %v229 = vpop.f32.mrf.mxu0
    %v230 = vadd.f32 %v170, %v229
    %v231 = vpop.f32.mrf.mxu0
    %232 = vdwg.mxu0
    %v233 = vmax.f32 %v230, 0.0
    %v234 = vld [vmem:[%s118] sm:$0x1]
    %v236 = vperm.slane %v234, 0
    %v238 = vmul.f32 %v233, %v236
    %vm239 = vcmask 1041408
    %v240 = vsel %vm239, %v238, 0.0
    %241 = vadd.xlane.f32.xlu0 %v240
    %v242 = vpop.xlane.xlu0 %241
    %s243 = sld [smem:[#allocation12 + %s121]]
    %v244 = vstv %s243
    %v245 = vadd.f32 %v242, %v244
    %vm246 = vcmask 1024
    %247 = vst.msk [vmem:[%s8] sm:$0x3] %vm246, %v245
    // Predicated region
    $region50: #{value_network_forward.1} parent=1 // pred_check
      _
    $region51: #{value_network_forward.1} parent=1 // pred_check_branch
      %249 = sbr.rel (0) target = $region53
    $region52: #{value_network_forward.1} parent=1 // pred_region
      _
    $region53: #{value_network_forward.1} parent=1 // pred_fallthru
      _
    // Predicated region
    $region54: #{value_network_forward.1} parent=1 // pred_check
      _
    $region55: #{value_network_forward.1} parent=1 // pred_check_branch
      %251 = sbr.rel (0) target = $region57
    $region56: #{value_network_forward.1} parent=1 // pred_region
      _
    $region57: #{value_network_forward.1} parent=1 // pred_fallthru
      _
    %252 = vsyncpa [#allocation5], 1
    %253 = vsyncpa [#allocation8], 1
    %254 = vsyncpa [#allocation11], 1
    %255 = vsyncpa [#allocation6], 1

</llo_original>
